<compile_context>
chip_gen: v5e
topology: v5e:2x2
jax: 0.10.0
libtpu: 0.0.40
codegen_flags: <defaults>
</compile_context>

<pallas_src>
import functools

import jax
import jax.numpy as jnp
from jax.experimental import pallas as pl
from jax.experimental.pallas import tpu as pltpu

LANE = 128
SUBLANE = 8
VMEM_LIMIT = 48 * 1024 * 1024  # below v7x's 64 MiB physical VMEM


def _round_up(n, m):
    return ((n + m - 1) // m) * m


def _swish(v):
    # v * sigmoid(v); divide routed through pl.reciprocal (exp + recip on EUP slot).
    return v * pl.reciprocal(1.0 + jnp.exp(-v), approx=False)


# ---------------------------------------------------------------------------
# Kernel 1: per-edge "down" path
#   x_ji      = act(lin_ji(x))
#   x_kj_down = act(lin_down(act(lin_kj(x)) * (rbf @ Wrbf_fused)))
# ---------------------------------------------------------------------------
def _edge_down_kernel(x_ref, rbf_ref,
                      wji_ref, bji_ref, wkj_ref, bkj_ref,
                      wrbf_ref, wdown_ref,
                      xji_ref, xkjd_ref):
    f32 = jnp.float32
    x = x_ref[...]
    xji_ref[...] = _swish(
        jnp.dot(x, wji_ref[...], preferred_element_type=f32) + bji_ref[...])
    x_kj = _swish(
        jnp.dot(x, wkj_ref[...], preferred_element_type=f32) + bkj_ref[...])
    rbf_p = jnp.dot(rbf_ref[...], wrbf_ref[...], preferred_element_type=f32)
    x_kj = x_kj * rbf_p
    xkjd_ref[...] = _swish(
        jnp.dot(x_kj, wdown_ref[...], preferred_element_type=f32))


# ---------------------------------------------------------------------------
# Kernel 2: triplet gather * sbf, segment-sum scatter over idx_ji.
#   acc[idx_ji[t]] += x_kj_down[idx_kj[t]] * (sbf[t] @ Wsbf_fused)
# Grid iterates triplet tiles ("arbitrary"); acc is a VMEM-resident accumulator.
# Indices live in SMEM via scalar prefetch.
# ---------------------------------------------------------------------------
def _triplet_scatter_kernel(idxkj_ref, idxji_ref,        # scalar prefetch (SMEM)
                            xkjd_ref, sbf_ref, wsbf_ref,  # inputs
                            acc_ref,                      # output (resident)
                            sbfp_ref,                     # VMEM scratch [TT, Ip]
                            *, tt):
    t = pl.program_id(0)

    @pl.when(t == 0)
    def _():
        acc_ref[...] = jnp.zeros_like(acc_ref)

    # Project the sbf tile once (vectorized, MXU) into scratch.
    sbfp_ref[...] = jnp.dot(sbf_ref[...], wsbf_ref[...],
                            preferred_element_type=jnp.float32)

    base = t * tt

    def body(i, carry):
        k = idxkj_ref[base + i]
        j = idxji_ref[base + i]
        row = xkjd_ref[pl.ds(k, 1), :] * sbfp_ref[pl.ds(i, 1), :]
        acc_ref[pl.ds(j, 1), :] = acc_ref[pl.ds(j, 1), :] + row
        return carry

    jax.lax.fori_loop(0, tt, body, 0)


# ---------------------------------------------------------------------------
# Kernel 3: per-edge "up" path + residual stack
# ---------------------------------------------------------------------------
def _edge_up_kernel(x_ref, xji_ref, agg_ref,
                    wup_ref,
                    wb1_ref, bb1_ref, wb2_ref, bb2_ref,
                    wlin_ref, blin_ref,
                    wa1_ref, ba1_ref, wa2_ref, ba2_ref,
                    out_ref, *, num_before_skip, num_after_skip):
    f32 = jnp.float32
    x_kj = _swish(jnp.dot(agg_ref[...], wup_ref[...], preferred_element_type=f32))
    h = xji_ref[...] + x_kj
    for l in range(num_before_skip):
        t = _swish(jnp.dot(h, wb1_ref[l], preferred_element_type=f32) + bb1_ref[l])
        t = _swish(jnp.dot(t, wb2_ref[l], preferred_element_type=f32) + bb2_ref[l])
        h = h + t
    h = _swish(jnp.dot(h, wlin_ref[...], preferred_element_type=f32)
               + blin_ref[...]) + x_ref[...]
    for l in range(num_after_skip):
        t = _swish(jnp.dot(h, wa1_ref[l], preferred_element_type=f32) + ba1_ref[l])
        t = _swish(jnp.dot(t, wa2_ref[l], preferred_element_type=f32) + ba2_ref[l])
        h = h + t
    out_ref[...] = h


# ---------------------------------------------------------------------------
# Wrapper
# ---------------------------------------------------------------------------
def _pad2(a, rows, cols):
    r, c = a.shape
    return jnp.pad(a, ((0, rows - r), (0, cols - c)))


def _pad3(a, rows, cols):
    _, r, c = a.shape
    return jnp.pad(a, ((0, 0), (0, rows - r), (0, cols - c)))


def interaction_pp_block(x, rbf, sbf, idx_kj, idx_ji, params,
                         num_before_skip, num_after_skip,
                         edge_tile=256, triplet_tile=512):
    E, H = x.shape
    T, SR = sbf.shape
    NR = rbf.shape[1]
    I = params["wdown"].shape[1]

    # lane-padded feature dims
    Hp = _round_up(H, LANE)
    Ip = _round_up(I, LANE)
    NRp = _round_up(NR, LANE)
    SRp = _round_up(SR, LANE)

    # row tiles (multiples of 8 sublanes)
    TE = min(edge_tile, _round_up(E, SUBLANE))
    E_pad = _round_up(E, TE)
    TT = min(triplet_tile, _round_up(T, SUBLANE))
    T_pad = _round_up(T, TT)

    f32 = jnp.float32
    xp = _pad2(x.astype(f32), E_pad, Hp)
    rbfp = _pad2(rbf.astype(f32), E_pad, NRp)
    sbfp = _pad2(sbf.astype(f32), T_pad, SRp)     # padded triplets have zero sbf rows
    ikj = jnp.zeros((T_pad,), jnp.int32).at[:T].set(idx_kj.astype(jnp.int32))
    iji = jnp.zeros((T_pad,), jnp.int32).at[:T].set(idx_ji.astype(jnp.int32))

    # fuse the bottleneck projections (no nonlinearity in between -> exact)
    wrbf = _pad2(params["wrbf1"] @ params["wrbf2"], NRp, Hp)   # [NRp, Hp]
    wsbf = _pad2(params["wsbf1"] @ params["wsbf2"], SRp, Ip)   # [SRp, Ip]

    wji = _pad2(params["wji"], Hp, Hp)
    bji = _pad2(params["bji"], 1, Hp)
    wkj = _pad2(params["wkj"], Hp, Hp)
    bkj = _pad2(params["bkj"], 1, Hp)
    wdown = _pad2(params["wdown"], Hp, Ip)
    wup = _pad2(params["wup"], Ip, Hp)
    wlin = _pad2(params["wlin"], Hp, Hp)
    blin = _pad2(params["blin"], 1, Hp)
    wb1 = _pad3(params["wb1"], Hp, Hp)
    bb1 = _pad3(params["bb1"], 1, Hp)
    wb2 = _pad3(params["wb2"], Hp, Hp)
    bb2 = _pad3(params["bb2"], 1, Hp)
    wa1 = _pad3(params["wa1"], Hp, Hp)
    ba1 = _pad3(params["ba1"], 1, Hp)
    wa2 = _pad3(params["wa2"], Hp, Hp)
    ba2 = _pad3(params["ba2"], 1, Hp)

    nE = E_pad // TE
    nT = T_pad // TT

    # ---------------- kernel 1: edge down path ----------------
    cost1 = pl.CostEstimate(
        flops=2 * E_pad * (2 * Hp * Hp + NRp * Hp + Hp * Ip),
        transcendentals=E_pad * (2 * Hp + Ip),
        bytes_accessed=4 * (E_pad * (2 * Hp + NRp + Hp + Ip)
                            + 2 * Hp * Hp + NRp * Hp + Hp * Ip + 2 * Hp))
    x_ji, x_kj_down = pl.pallas_call(
        _edge_down_kernel,
        out_shape=(jax.ShapeDtypeStruct((E_pad, Hp), f32),
                   jax.ShapeDtypeStruct((E_pad, Ip), f32)),
        grid=(nE,),
        in_specs=[
            pl.BlockSpec((TE, Hp), lambda i: (i, 0)),     # x tile
            pl.BlockSpec((TE, NRp), lambda i: (i, 0)),    # rbf tile
            pl.BlockSpec((Hp, Hp), lambda i: (0, 0)),     # wji (resident)
            pl.BlockSpec((1, Hp), lambda i: (0, 0)),      # bji
            pl.BlockSpec((Hp, Hp), lambda i: (0, 0)),     # wkj
            pl.BlockSpec((1, Hp), lambda i: (0, 0)),      # bkj
            pl.BlockSpec((NRp, Hp), lambda i: (0, 0)),    # fused wrbf
            pl.BlockSpec((Hp, Ip), lambda i: (0, 0)),     # wdown
        ],
        out_specs=(pl.BlockSpec((TE, Hp), lambda i: (i, 0)),
                   pl.BlockSpec((TE, Ip), lambda i: (i, 0))),
        compiler_params=pltpu.CompilerParams(
            dimension_semantics=("parallel",),
            vmem_limit_bytes=VMEM_LIMIT),
        cost_estimate=cost1,
    )(xp, rbfp, wji, bji, wkj, bkj, wrbf, wdown)

    # ---------------- kernel 2: triplet gather/scatter ----------------
    cost2 = pl.CostEstimate(
        flops=2 * T_pad * SRp * Ip + 2 * T_pad * Ip,
        transcendentals=0,
        bytes_accessed=4 * (T_pad * SRp + SRp * Ip + 2 * E_pad * Ip + T_pad * Ip))
    kernel2 = functools.partial(_triplet_scatter_kernel, tt=TT)
    x_kj_agg = pl.pallas_call(
        kernel2,
        out_shape=jax.ShapeDtypeStruct((E_pad, Ip), f32),
        grid_spec=pltpu.PrefetchScalarGridSpec(
            num_scalar_prefetch=2,
            grid=(nT,),
            in_specs=[
                pl.BlockSpec((E_pad, Ip), lambda t, ikj_, iji_: (0, 0)),  # x_kj_down (resident)
                pl.BlockSpec((TT, SRp), lambda t, ikj_, iji_: (t, 0)),    # sbf tile
                pl.BlockSpec((SRp, Ip), lambda t, ikj_, iji_: (0, 0)),    # fused wsbf
            ],
            out_specs=pl.BlockSpec((E_pad, Ip), lambda t, ikj_, iji_: (0, 0)),
            scratch_shapes=[pltpu.VMEM((TT, Ip), f32)],
        ),
        compiler_params=pltpu.CompilerParams(
            dimension_semantics=("arbitrary",),
            vmem_limit_bytes=VMEM_LIMIT),
        cost_estimate=cost2,
    )(ikj, iji, x_kj_down, sbfp, wsbf)

    # ---------------- kernel 3: edge up path + residuals ----------------
    n_mm = 1 + 2 * (num_before_skip + num_after_skip) + 1
    cost3 = pl.CostEstimate(
        flops=2 * E_pad * Hp * (Ip + (n_mm - 1) * Hp),
        transcendentals=E_pad * Hp * n_mm,
        bytes_accessed=4 * (E_pad * (3 * Hp + Ip)
                            + Ip * Hp + (n_mm - 1) * (Hp * Hp + Hp)))
    kernel3 = functools.partial(_edge_up_kernel,
                                num_before_skip=num_before_skip,
                                num_after_skip=num_after_skip)
    out = pl.pallas_call(
        kernel3,
        out_shape=jax.ShapeDtypeStruct((E_pad, Hp), f32),
        grid=(nE,),
        in_specs=[
            pl.BlockSpec((TE, Hp), lambda i: (i, 0)),   # x tile
            pl.BlockSpec((TE, Hp), lambda i: (i, 0)),   # x_ji tile
            pl.BlockSpec((TE, Ip), lambda i: (i, 0)),   # aggregated x_kj tile
            pl.BlockSpec((Ip, Hp), lambda i: (0, 0)),   # wup (resident)
            pl.BlockSpec((num_before_skip, Hp, Hp), lambda i: (0, 0, 0)),
            pl.BlockSpec((num_before_skip, 1, Hp), lambda i: (0, 0, 0)),
            pl.BlockSpec((num_before_skip, Hp, Hp), lambda i: (0, 0, 0)),
            pl.BlockSpec((num_before_skip, 1, Hp), lambda i: (0, 0, 0)),
            pl.BlockSpec((Hp, Hp), lambda i: (0, 0)),
            pl.BlockSpec((1, Hp), lambda i: (0, 0)),
            pl.BlockSpec((num_after_skip, Hp, Hp), lambda i: (0, 0, 0)),
            pl.BlockSpec((num_after_skip, 1, Hp), lambda i: (0, 0, 0)),
            pl.BlockSpec((num_after_skip, Hp, Hp), lambda i: (0, 0, 0)),
            pl.BlockSpec((num_after_skip, 1, Hp), lambda i: (0, 0, 0)),
        ],
        out_specs=pl.BlockSpec((TE, Hp), lambda i: (i, 0)),
        compiler_params=pltpu.CompilerParams(
            dimension_semantics=("parallel",),
            vmem_limit_bytes=VMEM_LIMIT),
        cost_estimate=cost3,
    )(xp, x_ji, x_kj_agg, wup, wb1, bb1, wb2, bb2, wlin, blin, wa1, ba1, wa2, ba2)

    return out[:E, :H]


# ---------------------------------------------------------------------------
# Pure-JAX reference (mirrors the PyTorch forward)
# ---------------------------------------------------------------------------
def interaction_pp_block_ref(x, rbf, sbf, idx_kj, idx_ji, params,
                             num_before_skip, num_after_skip):
    act = lambda v: v * jax.nn.sigmoid(v)
    p = params
    E = x.shape[0]

    x_ji = act(x @ p["wji"] + p["bji"])
    x_kj = act(x @ p["wkj"] + p["bkj"])
    rbf_p = (rbf @ p["wrbf1"]) @ p["wrbf2"]
    x_kj = x_kj * rbf_p
    x_kj = act(x_kj @ p["wdown"])
    sbf_p = (sbf @ p["wsbf1"]) @ p["wsbf2"]
    m = x_kj[idx_kj] * sbf_p
    x_kj = jax.ops.segment_sum(m, idx_ji, num_segments=E)
    x_kj = act(x_kj @ p["wup"])
    h = x_ji + x_kj
    for l in range(num_before_skip):
        t = act(h @ p["wb1"][l] + p["bb1"][l])
        t = act(t @ p["wb2"][l] + p["bb2"][l])
        h = h + t
    h = act(h @ p["wlin"] + p["blin"]) + x
    for l in range(num_after_skip):
        t = act(h @ p["wa1"][l] + p["ba1"][l])
        t = act(t @ p["wa2"][l] + p["ba2"][l])
        h = h + t
    return h


# ---------------------------------------------------------------------------
# Deterministic synthetic parameters (weights stored pre-transposed [in, out])
# ---------------------------------------------------------------------------
def make_params(key, hidden, int_emb, basis_emb, num_spherical, num_radial,
                num_before_skip, num_after_skip):
    def dense(k, fan_in, fan_out):
        scale = jnp.sqrt(2.0 / (fan_in + fan_out))
        return scale * jax.random.normal(k, (fan_in, fan_out), jnp.float32)

    keys = jax.random.split(key, 16)
    sr = num_spherical * num_radial
    params = {
        "wji":   dense(keys[0], hidden, hidden),
        "bji":   0.1 * jax.random.normal(keys[11], (1, hidden), jnp.float32),
        "wkj":   dense(keys[1], hidden, hidden),
        "bkj":   0.1 * jax.random.normal(keys[12], (1, hidden), jnp.float32),
        "wrbf1": dense(keys[2], num_radial, basis_emb),
        "wrbf2": dense(keys[3], basis_emb, hidden),
        "wsbf1": dense(keys[4], sr, basis_emb),
        "wsbf2": dense(keys[5], basis_emb, int_emb),
        "wdown": dense(keys[6], hidden, int_emb),
        "wup":   dense(keys[7], int_emb, hidden),
        "wlin":  dense(keys[8], hidden, hidden),
        "blin":  0.1 * jax.random.normal(keys[13], (1, hidden), jnp.float32),
    }
    kb = jax.random.split(keys[9], max(1, 2 * num_before_skip))
    ka = jax.random.split(keys[10], max(1, 2 * num_after_skip))
    params["wb1"] = jnp.stack([dense(kb[2 * l], hidden, hidden)
                               for l in range(num_before_skip)])
    params["wb2"] = jnp.stack([dense(kb[2 * l + 1], hidden, hidden)
                               for l in range(num_before_skip)])
    params["bb1"] = 0.1 * jax.random.normal(keys[14], (num_before_skip, 1, hidden), jnp.float32)
    params["bb2"] = jnp.zeros((num_before_skip, 1, hidden), jnp.float32)
    params["wa1"] = jnp.stack([dense(ka[2 * l], hidden, hidden)
                               for l in range(num_after_skip)])
    params["wa2"] = jnp.stack([dense(ka[2 * l + 1], hidden, hidden)
                               for l in range(num_after_skip)])
    params["ba1"] = 0.1 * jax.random.normal(keys[15], (num_after_skip, 1, hidden), jnp.float32)
    params["ba2"] = jnp.zeros((num_after_skip, 1, hidden), jnp.float32)
    return params


# ---------------------------------------------------------------------------
if __name__ == "__main__":
    hidden_channels = 32
    int_emb_size    = 16
    basis_emb_size  = 8
    num_spherical   = 4
    num_radial      = 8
    num_before_skip = 1
    num_after_skip  = 2
    E = 48    # edges
    T = 80    # triplets

    root = jax.random.PRNGKey(0)
    kx, krbf, ksbf, kkj, kji, kparams = jax.random.split(root, 6)

    x   = jax.random.normal(kx,   (E, hidden_channels), jnp.float32)
    rbf = jax.random.normal(krbf, (E, num_radial), jnp.float32)
    sbf = jax.random.normal(ksbf, (T, num_spherical * num_radial), jnp.float32)
    idx_kj = jax.random.randint(kkj, (T,), 0, E, jnp.int32)
    idx_ji = jax.random.randint(kji, (T,), 0, E, jnp.int32)

    params = make_params(kparams, hidden_channels, int_emb_size, basis_emb_size,
                         num_spherical, num_radial, num_before_skip, num_after_skip)

    # small tiles so the test exercises multiple grid steps + padded triplets
    out = interaction_pp_block(x, rbf, sbf, idx_kj, idx_ji, params,
                               num_before_skip, num_after_skip,
                               edge_tile=16, triplet_tile=32)
    out = jax.block_until_ready(out)

    ref = interaction_pp_block_ref(x, rbf, sbf, idx_kj, idx_ji, params,
                                   num_before_skip, num_after_skip)
    ref = jax.block_until_ready(ref)

    assert out.shape == (E, hidden_channels)
    max_err = float(jnp.max(jnp.abs(out - ref)))
    assert jnp.allclose(out, ref, atol=2e-4, rtol=2e-4), max_err
    print("KERNEL_OK")
</pallas_src>

<mosaic_0001>
module attributes {stable_mosaic.version = 11 : i64} {
  func.func @_edge_down_kernel(%arg0: i32, %arg1: memref<16x128xf32, #tpu.memory_space<vmem>>, %arg2: memref<16x128xf32, #tpu.memory_space<vmem>>, %arg3: memref<128x128xf32, #tpu.memory_space<vmem>>, %arg4: memref<1x128xf32, #tpu.memory_space<vmem>>, %arg5: memref<128x128xf32, #tpu.memory_space<vmem>>, %arg6: memref<1x128xf32, #tpu.memory_space<vmem>>, %arg7: memref<128x128xf32, #tpu.memory_space<vmem>>, %arg8: memref<128x128xf32, #tpu.memory_space<vmem>>, %arg9: memref<16x128xf32, #tpu.memory_space<vmem>>, %arg10: memref<16x128xf32, #tpu.memory_space<vmem>>) attributes {dimension_semantics = [#tpu.dimension_semantics<parallel>], iteration_bounds = array<i64: 3>, scalar_prefetch = 0 : i64, scratch_operands = 0 : i64, tpu.core_type = #tpu.core_type<tc>, window_params = [{transform_indices = @transform_0, window_bounds = array<i64: 16, 128>}, {transform_indices = @transform_1, window_bounds = array<i64: 16, 128>}, {pipeline_mode = #tpu.pipeline_mode<synchronous>, transform_indices = @transform_2, window_bounds = array<i64: 128, 128>}, {pipeline_mode = #tpu.pipeline_mode<synchronous>, transform_indices = @transform_3, window_bounds = array<i64: 1, 128>}, {pipeline_mode = #tpu.pipeline_mode<synchronous>, transform_indices = @transform_4, window_bounds = array<i64: 128, 128>}, {pipeline_mode = #tpu.pipeline_mode<synchronous>, transform_indices = @transform_5, window_bounds = array<i64: 1, 128>}, {pipeline_mode = #tpu.pipeline_mode<synchronous>, transform_indices = @transform_6, window_bounds = array<i64: 128, 128>}, {pipeline_mode = #tpu.pipeline_mode<synchronous>, transform_indices = @transform_7, window_bounds = array<i64: 128, 128>}, {transform_indices = @transform_8, window_bounds = array<i64: 16, 128>}, {transform_indices = @transform_9, window_bounds = array<i64: 16, 128>}]} {
    %c0 = arith.constant 0 : index
    %c0_0 = arith.constant 0 : index
    %0 = vector.load %arg1[%c0, %c0_0] : memref<16x128xf32, #tpu.memory_space<vmem>>, vector<16x128xf32>
    %c0_1 = arith.constant 0 : index
    %c0_2 = arith.constant 0 : index
    %1 = vector.load %arg3[%c0_1, %c0_2] : memref<128x128xf32, #tpu.memory_space<vmem>>, vector<128x128xf32>
    %cst = arith.constant dense<0.000000e+00> : vector<16x128xf32>
    %2 = tpu.matmul %0, %1, %cst {dimension_numbers = #tpu.dot_dimension_numbers<[1], [0], [0], [1], [0, 0, 1, 1], [], []>} : vector<16x128xf32>, vector<128x128xf32>, vector<16x128xf32> -> vector<16x128xf32>
    %c0_3 = arith.constant 0 : index
    %c0_4 = arith.constant 0 : index
    %3 = vector.load %arg4[%c0_3, %c0_4] : memref<1x128xf32, #tpu.memory_space<vmem>>, vector<1x128xf32>
    %4 = vector.broadcast %3 : vector<1x128xf32> to vector<16x128xf32>
    %5 = arith.addf %2, %4 : vector<16x128xf32>
    %cst_5 = arith.constant 0.000000e+00 : f32
    %6 = vector.broadcast %cst_5 : f32 to vector<16x128xf32>
    %7 = arith.subf %6, %5 : vector<16x128xf32>
    %8 = math.exp %7 : vector<16x128xf32>
    %cst_6 = arith.constant 1.000000e+00 : f32
    %9 = vector.broadcast %cst_6 : f32 to vector<16x128xf32>
    %10 = arith.addf %9, %8 : vector<16x128xf32>
    %11 = tpu.reciprocal %10 : vector<16x128xf32> -> vector<16x128xf32>
    %12 = arith.mulf %5, %11 : vector<16x128xf32>
    %c0_7 = arith.constant 0 : index
    %c0_8 = arith.constant 0 : index
    %13 = vector.load %arg9[%c0_7, %c0_8] : memref<16x128xf32, #tpu.memory_space<vmem>>, vector<16x128xf32>
    tpu.vector_store %arg9[%c0_7, %c0_8], %12 {strides = array<i32>} : memref<16x128xf32, #tpu.memory_space<vmem>>, vector<16x128xf32>,
    %c0_9 = arith.constant 0 : index
    %c0_10 = arith.constant 0 : index
    %14 = vector.load %arg5[%c0_9, %c0_10] : memref<128x128xf32, #tpu.memory_space<vmem>>, vector<128x128xf32>
    %cst_11 = arith.constant dense<0.000000e+00> : vector<16x128xf32>
    %15 = tpu.matmul %0, %14, %cst_11 {dimension_numbers = #tpu.dot_dimension_numbers<[1], [0], [0], [1], [0, 0, 1, 1], [], []>} : vector<16x128xf32>, vector<128x128xf32>, vector<16x128xf32> -> vector<16x128xf32>
    %c0_12 = arith.constant 0 : index
    %c0_13 = arith.constant 0 : index
    %16 = vector.load %arg6[%c0_12, %c0_13] : memref<1x128xf32, #tpu.memory_space<vmem>>, vector<1x128xf32>
    %17 = vector.broadcast %16 : vector<1x128xf32> to vector<16x128xf32>
    %18 = arith.addf %15, %17 : vector<16x128xf32>
    %cst_14 = arith.constant 0.000000e+00 : f32
    %19 = vector.broadcast %cst_14 : f32 to vector<16x128xf32>
    %20 = arith.subf %19, %18 : vector<16x128xf32>
    %21 = math.exp %20 : vector<16x128xf32>
    %cst_15 = arith.constant 1.000000e+00 : f32
    %22 = vector.broadcast %cst_15 : f32 to vector<16x128xf32>
    %23 = arith.addf %22, %21 : vector<16x128xf32>
    %24 = tpu.reciprocal %23 : vector<16x128xf32> -> vector<16x128xf32>
    %25 = arith.mulf %18, %24 : vector<16x128xf32>
    %c0_16 = arith.constant 0 : index
    %c0_17 = arith.constant 0 : index
    %26 = vector.load %arg2[%c0_16, %c0_17] : memref<16x128xf32, #tpu.memory_space<vmem>>, vector<16x128xf32>
    %c0_18 = arith.constant 0 : index
    %c0_19 = arith.constant 0 : index
    %27 = vector.load %arg7[%c0_18, %c0_19] : memref<128x128xf32, #tpu.memory_space<vmem>>, vector<128x128xf32>
    %cst_20 = arith.constant dense<0.000000e+00> : vector<16x128xf32>
    %28 = tpu.matmul %26, %27, %cst_20 {dimension_numbers = #tpu.dot_dimension_numbers<[1], [0], [0], [1], [0, 0, 1, 1], [], []>} : vector<16x128xf32>, vector<128x128xf32>, vector<16x128xf32> -> vector<16x128xf32>
    %29 = arith.mulf %25, %28 : vector<16x128xf32>
    %c0_21 = arith.constant 0 : index
    %c0_22 = arith.constant 0 : index
    %30 = vector.load %arg8[%c0_21, %c0_22] : memref<128x128xf32, #tpu.memory_space<vmem>>, vector<128x128xf32>
    %cst_23 = arith.constant dense<0.000000e+00> : vector<16x128xf32>
    %31 = tpu.matmul %29, %30, %cst_23 {dimension_numbers = #tpu.dot_dimension_numbers<[1], [0], [0], [1], [0, 0, 1, 1], [], []>} : vector<16x128xf32>, vector<128x128xf32>, vector<16x128xf32> -> vector<16x128xf32>
    %cst_24 = arith.constant 0.000000e+00 : f32
    %32 = vector.broadcast %cst_24 : f32 to vector<16x128xf32>
    %33 = arith.subf %32, %31 : vector<16x128xf32>
    %34 = math.exp %33 : vector<16x128xf32>
    %cst_25 = arith.constant 1.000000e+00 : f32
    %35 = vector.broadcast %cst_25 : f32 to vector<16x128xf32>
    %36 = arith.addf %35, %34 : vector<16x128xf32>
    %37 = tpu.reciprocal %36 : vector<16x128xf32> -> vector<16x128xf32>
    %38 = arith.mulf %31, %37 : vector<16x128xf32>
    %c0_26 = arith.constant 0 : index
    %c0_27 = arith.constant 0 : index
    %39 = vector.load %arg10[%c0_26, %c0_27] : memref<16x128xf32, #tpu.memory_space<vmem>>, vector<16x128xf32>
    tpu.vector_store %arg10[%c0_26, %c0_27], %38 {strides = array<i32>} : memref<16x128xf32, #tpu.memory_space<vmem>>, vector<16x128xf32>,
    return
  }
  func.func @transform_0(%arg0: i32) -> (i32, i32) {
    %c0_i32 = arith.constant 0 : i32
    %c0_i32_0 = arith.constant 0 : i32
    return %arg0, %c0_i32 : i32, i32
  }
  func.func @transform_1(%arg0: i32) -> (i32, i32) {
    %c0_i32 = arith.constant 0 : i32
    %c0_i32_0 = arith.constant 0 : i32
    return %arg0, %c0_i32 : i32, i32
  }
  func.func @transform_2(%arg0: i32) -> (i32, i32) {
    %c0_i32 = arith.constant 0 : i32
    %c0_i32_0 = arith.constant 0 : i32
    %c0_i32_1 = arith.constant 0 : i32
    return %c0_i32, %c0_i32_0 : i32, i32
  }
  func.func @transform_3(%arg0: i32) -> (i32, i32) {
    %c0_i32 = arith.constant 0 : i32
    %c0_i32_0 = arith.constant 0 : i32
    %c0_i32_1 = arith.constant 0 : i32
    return %c0_i32, %c0_i32_0 : i32, i32
  }
  func.func @transform_4(%arg0: i32) -> (i32, i32) {
    %c0_i32 = arith.constant 0 : i32
    %c0_i32_0 = arith.constant 0 : i32
    %c0_i32_1 = arith.constant 0 : i32
    return %c0_i32, %c0_i32_0 : i32, i32
  }
  func.func @transform_5(%arg0: i32) -> (i32, i32) {
    %c0_i32 = arith.constant 0 : i32
    %c0_i32_0 = arith.constant 0 : i32
    %c0_i32_1 = arith.constant 0 : i32
    return %c0_i32, %c0_i32_0 : i32, i32
  }
  func.func @transform_6(%arg0: i32) -> (i32, i32) {
    %c0_i32 = arith.constant 0 : i32
    %c0_i32_0 = arith.constant 0 : i32
    %c0_i32_1 = arith.constant 0 : i32
    return %c0_i32, %c0_i32_0 : i32, i32
  }
  func.func @transform_7(%arg0: i32) -> (i32, i32) {
    %c0_i32 = arith.constant 0 : i32
    %c0_i32_0 = arith.constant 0 : i32
    %c0_i32_1 = arith.constant 0 : i32
    return %c0_i32, %c0_i32_0 : i32, i32
  }
  func.func @transform_8(%arg0: i32) -> (i32, i32) {
    %c0_i32 = arith.constant 0 : i32
    %c0_i32_0 = arith.constant 0 : i32
    return %arg0, %c0_i32 : i32, i32
  }
  func.func @transform_9(%arg0: i32) -> (i32, i32) {
    %c0_i32 = arith.constant 0 : i32
    %c0_i32_0 = arith.constant 0 : i32
    return %arg0, %c0_i32 : i32, i32
  }
}

</mosaic_0001>

<llo_original>
// kernel: tpu_custom_call.1
$region0: #{tpu_custom_call.1}
  #allocation0 [shape = 'u32[]', space=smem, size = 0x4, offset = 0x4, fixed_abs, tag = 'smem constant byte address 0x4 - core index']
  #allocation1 [shape = 'u32[72,128]{1,0:T(1,128)}', space=vmem, size = 0x9000, scoped, tag = 'internal scratch']
  %s0 = inlined_call_operand.hbm [shape: f32[48,128], index: 0, kind: input, shape index: {}]
  %s1 = inlined_call_operand.hbm [shape: f32[48,128], index: 1, kind: input, shape index: {}]
  %s2 = inlined_call_operand.hbm [shape: f32[128,128], index: 2, kind: input, shape index: {}]
  %s3 = inlined_call_operand.vmem [shape: f32[1,128], index: 3, kind: input, shape index: {}]
  %s4 = inlined_call_operand.hbm [shape: f32[128,128], index: 4, kind: input, shape index: {}]
  %s5 = inlined_call_operand.vmem [shape: f32[1,128], index: 5, kind: input, shape index: {}]
  %s6 = inlined_call_operand.hbm [shape: f32[128,128], index: 6, kind: input, shape index: {}]
  %s7 = inlined_call_operand.hbm [shape: f32[128,128], index: 7, kind: input, shape index: {}]
  %s8 = inlined_call_operand.hbm [shape: f32[48,128], index: 8, kind: output, shape index: {0}]
  %s9 = inlined_call_operand.hbm [shape: f32[48,128], index: 9, kind: output, shape index: {1}]
  %10 = xla_tuple %s8, %s9
  %s11 = sld [smem:[#allocation0]]
  $region97: #{tpu_custom_call.1} parent=0
    _
  %s13 = ssub.s32 1, %s11
  %s14 = scalar_select 0, %s13, %s11
  $region1: #{tpu_custom_call.1} parent=0
    #allocation2 [shape = 'u8[16384]{0}', space=vmem, size = 0x4000, scoped, tag = 'input window, operand 0']
    #allocation3 [shape = 's32[2]{0}', space=sflag, size = 0x8, scoped, tag = 'scoped memory for tpu_custom_call.1']
    #allocation4 [shape = 's32[2]{0}', space=sflag, size = 0x8, scoped, tag = 'scoped memory for tpu_custom_call.1']
    #allocation5 [shape = 'u8[16384]{0}', space=vmem, size = 0x4000, scoped, tag = 'input window, operand 1']
    #allocation6 [shape = 's32[2]{0}', space=sflag, size = 0x8, scoped, tag = 'scoped memory for tpu_custom_call.1']
    #allocation7 [shape = 'u8[65536]{0}', space=vmem, size = 0x10000, scoped, tag = 'input window, operand 2, single buffered']
    #allocation8 [shape = 'u8[65536]{0}', space=vmem, size = 0x10000, scoped, tag = 'input window, operand 4, single buffered']
    #allocation9 [shape = 's32[1]{0}', space=sflag, size = 0x4, scoped, tag = 'scoped memory for tpu_custom_call.1']
    #allocation10 [shape = 'u8[65536]{0}', space=vmem, size = 0x10000, scoped, tag = 'input window, operand 6, single buffered']
    #allocation11 [shape = 'u8[65536]{0}', space=vmem, size = 0x10000, scoped, tag = 'input window, operand 7, single buffered']
    #allocation12 [shape = 's32[1]{0}', space=sflag, size = 0x4, scoped, tag = 'scoped memory for tpu_custom_call.1']
    #allocation13 [shape = 'u8[16384]{0}', space=vmem, size = 0x4000, scoped, tag = 'output window, operand 0']
    #allocation14 [shape = 'u8[16384]{0}', space=vmem, size = 0x4000, scoped, tag = 'output window, operand 1']
    #allocation15 [shape = 's32[2]{0}', space=sflag, size = 0x8, scoped, tag = 'scoped memory for tpu_custom_call.1']
    %15 = vsyncpa [#allocation3], 0
    %s16 = scalar_lea.sflag [#allocation3], 1
    %17 = vsyncpa %s16, 0
    %18 = vsyncpa [#allocation6], 0
    %s19 = scalar_lea.sflag [#allocation6], 1
    %20 = vsyncpa %s19, 0
    %21 = vsyncpa [#allocation9], 0
    %22 = vsyncpa [#allocation12], 0
    %23 = vsyncpa [#allocation4], 0
    %s24 = scalar_lea.sflag [#allocation4], 1
    %25 = vsyncpa %s24, 0
    %26 = vsyncpa [#allocation15], 0
    %s27 = scalar_lea.sflag [#allocation15], 1
    %28 = vsyncpa %s27, 0
    loop: start=0, step=1, limit=5
    $region2: #{tpu_custom_call.1} parent=1 // loop_pre_header
      _
    $region3: #{tpu_custom_call.1} parent=1 // loop_header
      %s30 = sphi 0, %s34
      %p31 = scmp.ge.s32.totalorder %s30, 5
      %s40 = sphi 0, %s42
      %s43 = sphi 0, %s40
      %s44 = sphi 0, %s43
      %s60 = sphi 0, %s44
      %s66 = sphi 0, %s68
      %s69 = sphi 0, %s66
      %s70 = sphi 0, %s69
      %s86 = sphi 0, %s70
      %s90 = sphi 0, %s90
      %s92 = sphi 0, %s90
      %s93 = sphi 0, %s92
      %s107 = sphi 0, %s93
      %s111 = sphi 0, %s111
      %s113 = sphi 0, %s111
      %s114 = sphi 0, %s113
      %s128 = sphi 0, %s114
      %s132 = sphi 0, %s132
      %s134 = sphi 0, %s132
      %s135 = sphi 0, %s134
      %s149 = sphi 0, %s135
      %s153 = sphi 0, %s153
      %s155 = sphi 0, %s153
      %s156 = sphi 0, %s155
      %s170 = sphi 0, %s156
      %s174 = sphi 0, %s174
      %s176 = sphi 0, %s174
      %s177 = sphi 0, %s176
      %s191 = sphi 0, %s177
      %s195 = sphi 0, %s195
      %s197 = sphi 0, %s195
      %s198 = sphi 0, %s197
      %s212 = sphi 0, %s198
      %s218 = sphi 0, %s220
      %s221 = sphi 0, %s218
      %s222 = sphi 0, %s221
      %s238 = sphi 0, %s222
      %s244 = sphi 0, %s246
      %s247 = sphi 0, %s244
      %s248 = sphi 0, %s247
      %s264 = sphi 0, %s248
    $region4: #{tpu_custom_call.1} parent=1 // loop_header_branch
      %33 = sbr.rel (%p31) target = $region8
    $region5: #{tpu_custom_call.1} parent=1 // loop_body
      %s35 = ssub.s32 %s30, 1
      %s36 = ssub.s32 %s30, 2
      %s37 = sadd.s32 %s30, 1
      %s38 = ssub.s32 %s30, %s37
      %p39 = scmp.eq.s32.totalorder %s38, 0
      %s41 = sadd.s32 %s40, 1
      %s42 = scalar_select %p39, %s40, %s41
      %p45 = pneg %p39
      %p46 = scmp.eq.s32.totalorder %s30, 2
      %p47 = por %p45, %p46
      %p48 = scmp.ne.s32.totalorder %s40, %s43
      %p49 = scmp.eq.s32.totalorder %s30, 0
      %p50 = por %p48, %p49
      %p51 = scmp.ne.s32.totalorder %s40, %s43
      %p52 = scmp.eq.s32.totalorder %s35, 2
      %p53 = por %p51, %p52
      %p54 = scmp.ne.s32.totalorder %s43, %s44
      %p55 = scmp.eq.s32.totalorder %s35, 0
      %p56 = por %p54, %p55
      %p57 = scmp.ne.s32.totalorder %s43, %s44
      %p58 = scmp.eq.s32.totalorder %s36, 2
      %p59 = por %p57, %p58
      %p61 = scmp.ne.s32.totalorder %s44, %s60
      %p62 = scmp.eq.s32.totalorder %s36, 0
      %p63 = por %p61, %p62
      %s64 = ssub.s32 %s30, %s37
      %p65 = scmp.eq.s32.totalorder %s64, 0
      %s67 = sadd.s32 %s66, 1
      %s68 = scalar_select %p65, %s66, %s67
      %p71 = pneg %p65
      %p72 = scmp.eq.s32.totalorder %s30, 2
      %p73 = por %p71, %p72
      %p74 = scmp.ne.s32.totalorder %s66, %s69
      %p75 = scmp.eq.s32.totalorder %s30, 0
      %p76 = por %p74, %p75
      %p77 = scmp.ne.s32.totalorder %s66, %s69
      %p78 = scmp.eq.s32.totalorder %s35, 2
      %p79 = por %p77, %p78
      %p80 = scmp.ne.s32.totalorder %s69, %s70
      %p81 = scmp.eq.s32.totalorder %s35, 0
      %p82 = por %p80, %p81
      %p83 = scmp.ne.s32.totalorder %s69, %s70
      %p84 = scmp.eq.s32.totalorder %s36, 2
      %p85 = por %p83, %p84
      %p87 = scmp.ne.s32.totalorder %s70, %s86
      %p88 = scmp.eq.s32.totalorder %s36, 0
      %p89 = por %p87, %p88
      %s91 = sadd.s32 %s90, 1
      %p94 = scmp.eq.s32.totalorder %s30, 2
      %p95 = scmp.ne.s32.totalorder %s90, %s92
      %p96 = scmp.eq.s32.totalorder %s30, 0
      %p97 = por %p95, %p96
      %p98 = scmp.ne.s32.totalorder %s90, %s92
      %p99 = scmp.eq.s32.totalorder %s35, 2
      %p100 = por %p98, %p99
      %p101 = scmp.ne.s32.totalorder %s92, %s93
      %p102 = scmp.eq.s32.totalorder %s35, 0
      %p103 = por %p101, %p102
      %p104 = scmp.ne.s32.totalorder %s92, %s93
      %p105 = scmp.eq.s32.totalorder %s36, 2
      %p106 = por %p104, %p105
      %p108 = scmp.ne.s32.totalorder %s93, %s107
      %p109 = scmp.eq.s32.totalorder %s36, 0
      %p110 = por %p108, %p109
      %s112 = sadd.s32 %s111, 1
      %p115 = scmp.eq.s32.totalorder %s30, 2
      %p116 = scmp.ne.s32.totalorder %s111, %s113
      %p117 = scmp.eq.s32.totalorder %s30, 0
      %p118 = por %p116, %p117
      %p119 = scmp.ne.s32.totalorder %s111, %s113
      %p120 = scmp.eq.s32.totalorder %s35, 2
      %p121 = por %p119, %p120
      %p122 = scmp.ne.s32.totalorder %s113, %s114
      %p123 = scmp.eq.s32.totalorder %s35, 0
      %p124 = por %p122, %p123
      %p125 = scmp.ne.s32.totalorder %s113, %s114
      %p126 = scmp.eq.s32.totalorder %s36, 2
      %p127 = por %p125, %p126
      %p129 = scmp.ne.s32.totalorder %s114, %s128
      %p130 = scmp.eq.s32.totalorder %s36, 0
      %p131 = por %p129, %p130
      %s133 = sadd.s32 %s132, 1
      %p136 = scmp.eq.s32.totalorder %s30, 2
      %p137 = scmp.ne.s32.totalorder %s132, %s134
      %p138 = scmp.eq.s32.totalorder %s30, 0
      %p139 = por %p137, %p138
      %p140 = scmp.ne.s32.totalorder %s132, %s134
      %p141 = scmp.eq.s32.totalorder %s35, 2
      %p142 = por %p140, %p141
      %p143 = scmp.ne.s32.totalorder %s134, %s135
      %p144 = scmp.eq.s32.totalorder %s35, 0
      %p145 = por %p143, %p144
      %p146 = scmp.ne.s32.totalorder %s134, %s135
      %p147 = scmp.eq.s32.totalorder %s36, 2
      %p148 = por %p146, %p147
      %p150 = scmp.ne.s32.totalorder %s135, %s149
      %p151 = scmp.eq.s32.totalorder %s36, 0
      %p152 = por %p150, %p151
      %s154 = sadd.s32 %s153, 1
      %p157 = scmp.eq.s32.totalorder %s30, 2
      %p158 = scmp.ne.s32.totalorder %s153, %s155
      %p159 = scmp.eq.s32.totalorder %s30, 0
      %p160 = por %p158, %p159
      %p161 = scmp.ne.s32.totalorder %s153, %s155
      %p162 = scmp.eq.s32.totalorder %s35, 2
      %p163 = por %p161, %p162
      %p164 = scmp.ne.s32.totalorder %s155, %s156
      %p165 = scmp.eq.s32.totalorder %s35, 0
      %p166 = por %p164, %p165
      %p167 = scmp.ne.s32.totalorder %s155, %s156
      %p168 = scmp.eq.s32.totalorder %s36, 2
      %p169 = por %p167, %p168
      %p171 = scmp.ne.s32.totalorder %s156, %s170
      %p172 = scmp.eq.s32.totalorder %s36, 0
      %p173 = por %p171, %p172
      %s175 = sadd.s32 %s174, 1
      %p178 = scmp.eq.s32.totalorder %s30, 2
      %p179 = scmp.ne.s32.totalorder %s174, %s176
      %p180 = scmp.eq.s32.totalorder %s30, 0
      %p181 = por %p179, %p180
      %p182 = scmp.ne.s32.totalorder %s174, %s176
      %p183 = scmp.eq.s32.totalorder %s35, 2
      %p184 = por %p182, %p183
      %p185 = scmp.ne.s32.totalorder %s176, %s177
      %p186 = scmp.eq.s32.totalorder %s35, 0
      %p187 = por %p185, %p186
      %p188 = scmp.ne.s32.totalorder %s176, %s177
      %p189 = scmp.eq.s32.totalorder %s36, 2
      %p190 = por %p188, %p189
      %p192 = scmp.ne.s32.totalorder %s177, %s191
      %p193 = scmp.eq.s32.totalorder %s36, 0
      %p194 = por %p192, %p193
      %s196 = sadd.s32 %s195, 1
      %p199 = scmp.eq.s32.totalorder %s30, 2
      %p200 = scmp.ne.s32.totalorder %s195, %s197
      %p201 = scmp.eq.s32.totalorder %s30, 0
      %p202 = por %p200, %p201
      %p203 = scmp.ne.s32.totalorder %s195, %s197
      %p204 = scmp.eq.s32.totalorder %s35, 2
      %p205 = por %p203, %p204
      %p206 = scmp.ne.s32.totalorder %s197, %s198
      %p207 = scmp.eq.s32.totalorder %s35, 0
      %p208 = por %p206, %p207
      %p209 = scmp.ne.s32.totalorder %s197, %s198
      %p210 = scmp.eq.s32.totalorder %s36, 2
      %p211 = por %p209, %p210
      %p213 = scmp.ne.s32.totalorder %s198, %s212
      %p214 = scmp.eq.s32.totalorder %s36, 0
      %p215 = por %p213, %p214
      %s216 = ssub.s32 %s30, %s37
      %p217 = scmp.eq.s32.totalorder %s216, 0
      %s219 = sadd.s32 %s218, 1
      %s220 = scalar_select %p217, %s218, %s219
      %p223 = pneg %p217
      %p224 = scmp.eq.s32.totalorder %s30, 2
      %p225 = por %p223, %p224
      %p226 = scmp.ne.s32.totalorder %s218, %s221
      %p227 = scmp.eq.s32.totalorder %s30, 0
      %p228 = por %p226, %p227
      %p229 = scmp.ne.s32.totalorder %s218, %s221
      %p230 = scmp.eq.s32.totalorder %s35, 2
      %p231 = por %p229, %p230
      %p232 = scmp.ne.s32.totalorder %s221, %s222
      %p233 = scmp.eq.s32.totalorder %s35, 0
      %p234 = por %p232, %p233
      %p235 = scmp.ne.s32.totalorder %s221, %s222
      %p236 = scmp.eq.s32.totalorder %s36, 2
      %p237 = por %p235, %p236
      %p239 = scmp.ne.s32.totalorder %s222, %s238
      %p240 = scmp.eq.s32.totalorder %s36, 0
      %p241 = por %p239, %p240
      %s242 = ssub.s32 %s30, %s37
      %p243 = scmp.eq.s32.totalorder %s242, 0
      %s245 = sadd.s32 %s244, 1
      %s246 = scalar_select %p243, %s244, %s245
      %p249 = pneg %p243
      %p250 = scmp.eq.s32.totalorder %s30, 2
      %p251 = por %p249, %p250
      %p252 = scmp.ne.s32.totalorder %s244, %s247
      %p253 = scmp.eq.s32.totalorder %s30, 0
      %p254 = por %p252, %p253
      %p255 = scmp.ne.s32.totalorder %s244, %s247
      %p256 = scmp.eq.s32.totalorder %s35, 2
      %p257 = por %p255, %p256
      %p258 = scmp.ne.s32.totalorder %s247, %s248
      %p259 = scmp.eq.s32.totalorder %s35, 0
      %p260 = por %p258, %p259
      %p261 = scmp.ne.s32.totalorder %s247, %s248
      %p262 = scmp.eq.s32.totalorder %s36, 2
      %p263 = por %p261, %p262
      %p265 = scmp.ne.s32.totalorder %s248, %s264
      %p266 = scmp.eq.s32.totalorder %s36, 0
      %p267 = por %p265, %p266
      %p268 = scmp.le.s32.totalorder 1, %s30
      %p269 = scmp.lt.s32.totalorder %s30, 4
      %p270 = pnand %p268, %p269
      %p271 = pneg %p270
      // Predicated region
      $region9: #{tpu_custom_call.1} parent=5 // pred_check
        _
      $region10: #{tpu_custom_call.1} parent=5 // pred_check_branch
        %273 = sbr.rel (%p270) target = $region12
      $region11: #{tpu_custom_call.1} parent=5 // pred_region
        %s274 = ssub.s32 %s30, 1
        // Predicated region
        $region13: #{tpu_custom_call.1} parent=11 // pred_check
          %p275 = pneg %p103
        $region14: #{tpu_custom_call.1} parent=11 // pred_check_branch
          %277 = sbr.rel (%p275) target = $region16
        $region15: #{tpu_custom_call.1} parent=11 // pred_region
          %279 = vsyncadd [#allocation6], 0
          %s280 = sshll.u32 %s2, 4
          %s281 = int_to_ptr.hbm [resolvable:$true] %s280
          %s282 = sshll.u32 [#allocation7], 4
          %s283 = int_to_ptr.vmem [resolvable:$true] %s282
          %288 = dma.hbm_to_vmem [thread:$0]  %s281, 2048, %s283, [#allocation6], 128, 128, 8
        $region16: #{tpu_custom_call.1} parent=11 // pred_fallthru
          _
        // Predicated region
        $region17: #{tpu_custom_call.1} parent=11 // pred_check
          %p289 = pneg %p124
        $region18: #{tpu_custom_call.1} parent=11 // pred_check_branch
          %291 = sbr.rel (%p289) target = $region20
        $region19: #{tpu_custom_call.1} parent=11 // pred_region
          _
        $region20: #{tpu_custom_call.1} parent=11 // pred_fallthru
          _
        // Predicated region
        $region21: #{tpu_custom_call.1} parent=11 // pred_check
          %p292 = pneg %p145
        $region22: #{tpu_custom_call.1} parent=11 // pred_check_branch
          %294 = sbr.rel (%p292) target = $region24
        $region23: #{tpu_custom_call.1} parent=11 // pred_region
          %296 = vsyncadd [#allocation9], 0
          %s297 = sshll.u32 %s4, 4
          %s298 = int_to_ptr.hbm [resolvable:$true] %s297
          %s299 = sshll.u32 [#allocation8], 4
          %s300 = int_to_ptr.vmem [resolvable:$true] %s299
          %305 = dma.hbm_to_vmem [thread:$0]  %s298, 2048, %s300, [#allocation9], 128, 128, 8
        $region24: #{tpu_custom_call.1} parent=11 // pred_fallthru
          _
        // Predicated region
        $region25: #{tpu_custom_call.1} parent=11 // pred_check
          %p306 = pneg %p166
        $region26: #{tpu_custom_call.1} parent=11 // pred_check_branch
          %308 = sbr.rel (%p306) target = $region28
        $region27: #{tpu_custom_call.1} parent=11 // pred_region
          _
        $region28: #{tpu_custom_call.1} parent=11 // pred_fallthru
          _
        // Predicated region
        $region29: #{tpu_custom_call.1} parent=11 // pred_check
          %p309 = pneg %p187
        $region30: #{tpu_custom_call.1} parent=11 // pred_check_branch
          %311 = sbr.rel (%p309) target = $region32
        $region31: #{tpu_custom_call.1} parent=11 // pred_region
          %313 = vsyncadd [#allocation9], 0
          %s314 = sshll.u32 %s6, 4
          %s315 = int_to_ptr.hbm [resolvable:$true] %s314
          %s316 = sshll.u32 [#allocation10], 4
          %s317 = int_to_ptr.vmem [resolvable:$true] %s316
          %322 = dma.hbm_to_vmem [thread:$0]  %s315, 2048, %s317, [#allocation9], 128, 128, 8
        $region32: #{tpu_custom_call.1} parent=11 // pred_fallthru
          _
        // Predicated region
        $region33: #{tpu_custom_call.1} parent=11 // pred_check
          %p323 = pneg %p208
        $region34: #{tpu_custom_call.1} parent=11 // pred_check_branch
          %325 = sbr.rel (%p323) target = $region36
        $region35: #{tpu_custom_call.1} parent=11 // pred_region
          %327 = vsyncadd [#allocation12], 0
          %s328 = sshll.u32 %s7, 4
          %s329 = int_to_ptr.hbm [resolvable:$true] %s328
          %s330 = sshll.u32 [#allocation11], 4
          %s331 = int_to_ptr.vmem [resolvable:$true] %s330
          %336 = dma.hbm_to_vmem [thread:$0]  %s329, 2048, %s331, [#allocation12], 128, 128, 8
        $region36: #{tpu_custom_call.1} parent=11 // pred_fallthru
          _
      $region12: #{tpu_custom_call.1} parent=5 // pred_fallthru
        _
      %p337 = scmp.lt.s32.totalorder %s30, 3
      // Predicated region
      $region37: #{tpu_custom_call.1} parent=5 // pred_check
        %p338 = pneg %p337
      $region38: #{tpu_custom_call.1} parent=5 // pred_check_branch
        %340 = sbr.rel (%p338) target = $region40
      $region39: #{tpu_custom_call.1} parent=5 // pred_region
        // Predicated region
        $region41: #{tpu_custom_call.1} parent=39 // pred_check
          %p341 = pneg %p50
        $region42: #{tpu_custom_call.1} parent=39 // pred_check_branch
          %343 = sbr.rel (%p341) target = $region44
        $region43: #{tpu_custom_call.1} parent=39 // pred_region
          %s344 = sand.u32 %s40, 1
          %s345 = scalar_lea.sflag [#allocation3], %s344
          %s346 = sand.u32 %s40, 1
          %s347 = smul.addr %s346, 16
          %s348 = scalar_lea.vmem [#allocation2], %s347
          %s349 = smul.u32 2, %s30
          %351 = vsyncadd %s345, 0
          %s352 = smul.addr %s349, 8
          %s353 = scalar_lea.hbm %s0, %s352
          %s354 = sshll.u32 %s353, 4
          %s355 = int_to_ptr.hbm [resolvable:$true] %s354
          %s356 = sshll.u32 %s348, 4
          %s357 = int_to_ptr.vmem [resolvable:$true] %s356
          %362 = dma.hbm_to_vmem [thread:$0]  %s355, 256, %s357, %s345, 128, 128, 8
        $region44: #{tpu_custom_call.1} parent=39 // pred_fallthru
          _
        // Predicated region
        $region45: #{tpu_custom_call.1} parent=39 // pred_check
          %p363 = pneg %p76
        $region46: #{tpu_custom_call.1} parent=39 // pred_check_branch
          %365 = sbr.rel (%p363) target = $region48
        $region47: #{tpu_custom_call.1} parent=39 // pred_region
          %s366 = sand.u32 %s30, 1
          %s367 = scalar_lea.sflag [#allocation6], %s366
          %s368 = sand.u32 %s66, 1
          %s369 = smul.addr %s368, 16
          %s370 = scalar_lea.vmem [#allocation5], %s369
          %s371 = smul.u32 2, %s30
          %373 = vsyncadd %s367, 0
          %s374 = smul.addr %s371, 8
          %s375 = scalar_lea.hbm %s1, %s374
          %s376 = sshll.u32 %s375, 4
          %s377 = int_to_ptr.hbm [resolvable:$true] %s376
          %s378 = sshll.u32 %s370, 4
          %s379 = int_to_ptr.vmem [resolvable:$true] %s378
          %384 = dma.hbm_to_vmem [thread:$0]  %s377, 256, %s379, %s367, 128, 128, 8
        $region48: #{tpu_custom_call.1} parent=39 // pred_fallthru
          _
      $region40: #{tpu_custom_call.1} parent=5 // pred_fallthru
        _
      %p385 = scmp.le.s32.totalorder 1, %s30
      %p386 = scmp.lt.s32.totalorder %s30, 4
      %p387 = pnand %p385, %p386
      %p388 = pneg %p387
      // Predicated region
      $region49: #{tpu_custom_call.1} parent=5 // pred_check
        _
      $region50: #{tpu_custom_call.1} parent=5 // pred_check_branch
        %390 = sbr.rel (%p387) target = $region52
      $region51: #{tpu_custom_call.1} parent=5 // pred_region
        %s391 = ssub.s32 %s30, 1
        %s392 = sand.u32 %s43, 1
        %s393 = scalar_lea.sflag [#allocation3], %s392
        %s394 = sand.u32 %s43, 1
        %s395 = smul.addr %s394, 16
        %s396 = scalar_lea.vmem [#allocation2], %s395
        // Predicated region
        $region53: #{tpu_custom_call.1} parent=51 // pred_check
          %p397 = pneg %p56
        $region54: #{tpu_custom_call.1} parent=51 // pred_check_branch
          %399 = sbr.rel (%p397) target = $region56
        $region55: #{tpu_custom_call.1} parent=51 // pred_region
          %401 = dma.done %s393, 256
        $region56: #{tpu_custom_call.1} parent=51 // pred_fallthru
          _
        %s402 = sand.u32 %s35, 1
        %s403 = scalar_lea.sflag [#allocation6], %s402
        %s404 = sand.u32 %s69, 1
        %s405 = smul.addr %s404, 16
        %s406 = scalar_lea.vmem [#allocation5], %s405
        // Predicated region
        $region57: #{tpu_custom_call.1} parent=51 // pred_check
          %p407 = pneg %p82
        $region58: #{tpu_custom_call.1} parent=51 // pred_check_branch
          %409 = sbr.rel (%p407) target = $region60
        $region59: #{tpu_custom_call.1} parent=51 // pred_region
          %411 = dma.done %s403, 256
        $region60: #{tpu_custom_call.1} parent=51 // pred_fallthru
          _
        // Predicated region
        $region61: #{tpu_custom_call.1} parent=51 // pred_check
          %p412 = pneg %p103
        $region62: #{tpu_custom_call.1} parent=51 // pred_check_branch
          %414 = sbr.rel (%p412) target = $region64
        $region63: #{tpu_custom_call.1} parent=51 // pred_region
          %416 = dma.done [#allocation6], 2048
        $region64: #{tpu_custom_call.1} parent=51 // pred_fallthru
          _
        // Predicated region
        $region65: #{tpu_custom_call.1} parent=51 // pred_check
          %p417 = pneg %p145
        $region66: #{tpu_custom_call.1} parent=51 // pred_check_branch
          %419 = sbr.rel (%p417) target = $region68
        $region67: #{tpu_custom_call.1} parent=51 // pred_region
          %421 = dma.done [#allocation9], 2048
        $region68: #{tpu_custom_call.1} parent=51 // pred_fallthru
          _
        // Predicated region
        $region69: #{tpu_custom_call.1} parent=51 // pred_check
          %p422 = pneg %p187
        $region70: #{tpu_custom_call.1} parent=51 // pred_check_branch
          %424 = sbr.rel (%p422) target = $region72
        $region71: #{tpu_custom_call.1} parent=51 // pred_region
          %426 = dma.done [#allocation9], 2048
        $region72: #{tpu_custom_call.1} parent=51 // pred_fallthru
          _
        // Predicated region
        $region73: #{tpu_custom_call.1} parent=51 // pred_check
          %p427 = pneg %p208
        $region74: #{tpu_custom_call.1} parent=51 // pred_check_branch
          %429 = sbr.rel (%p427) target = $region76
        $region75: #{tpu_custom_call.1} parent=51 // pred_region
          %431 = dma.done [#allocation12], 2048
        $region76: #{tpu_custom_call.1} parent=51 // pred_fallthru
          _
        %s432 = sand.u32 %s43, 1
        %s433 = scalar_lea.sflag [#allocation3], %s432
        %s434 = sand.u32 %s43, 1
        %s435 = smul.addr %s434, 16
        %s436 = scalar_lea.vmem [#allocation2], %s435
        %p437 = pneg %p56
        %p438 = pneg %p53
        %s439 = sand.u32 %s35, 1
        %s440 = scalar_lea.sflag [#allocation6], %s439
        %s441 = sand.u32 %s69, 1
        %s442 = smul.addr %s441, 16
        %s443 = scalar_lea.vmem [#allocation5], %s442
        %p444 = pneg %p82
        %p445 = pneg %p79
        %p446 = pneg %p103
        %p447 = pneg %p100
        %p448 = pneg %p124
        %p449 = pneg %p121
        %p450 = pneg %p145
        %p451 = pneg %p142
        %p452 = pneg %p166
        %p453 = pneg %p163
        %p454 = pneg %p187
        %p455 = pneg %p184
        %p456 = pneg %p208
        %p457 = pneg %p205
        %p458 = pneg %p234
        %p459 = pneg %p231
        %s460 = sand.u32 %s221, 1
        %s461 = scalar_lea.sflag [#allocation4], %s460
        %s462 = sand.u32 %s221, 1
        %s463 = smul.addr %s462, 16
        %s464 = scalar_lea.vmem [#allocation13], %s463
        %p465 = pneg %p260
        %p466 = pneg %p257
        %s467 = sand.u32 %s247, 1
        %s468 = scalar_lea.sflag [#allocation15], %s467
        %s469 = sand.u32 %s247, 1
        %s470 = smul.addr %s469, 16
        %s471 = scalar_lea.vmem [#allocation14], %s470
        %s472 = smul.u32 2, %s35
        %s473 = smul.u32 2, %s35
        %s474 = smul.u32 2, %s35
        %s475 = smul.u32 2, %s35
        %v476 = vld [vmem:[%s396] sm:$0xff]
        %v477 = vld [vmem:[%s396 + $0x8] sm:$0xff]
        %v478 = vld [vmem:[#allocation7] sm:$0xff]
        %v479 = vld [vmem:[#allocation7 + $0x8] sm:$0xff]
        %v480 = vld [vmem:[#allocation7 + $0x10] sm:$0xff]
        %v481 = vld [vmem:[#allocation7 + $0x18] sm:$0xff]
        %v482 = vld [vmem:[#allocation7 + $0x20] sm:$0xff]
        %v483 = vld [vmem:[#allocation7 + $0x28] sm:$0xff]
        %v484 = vld [vmem:[#allocation7 + $0x30] sm:$0xff]
        %v485 = vld [vmem:[#allocation7 + $0x38] sm:$0xff]
        %v486 = vld [vmem:[#allocation7 + $0x40] sm:$0xff]
        %v487 = vld [vmem:[#allocation7 + $0x48] sm:$0xff]
        %v488 = vld [vmem:[#allocation7 + $0x50] sm:$0xff]
        %v489 = vld [vmem:[#allocation7 + $0x58] sm:$0xff]
        %v490 = vld [vmem:[#allocation7 + $0x60] sm:$0xff]
        %v491 = vld [vmem:[#allocation7 + $0x68] sm:$0xff]
        %v492 = vld [vmem:[#allocation7 + $0x70] sm:$0xff]
        %v493 = vld [vmem:[#allocation7 + $0x78] sm:$0xff]
        %v494 = vld [vmem:[%s3] sm:$0x1]
        %v496 = vperm.slane %v494, 0
        %498 = vmatpush.msra.mxu0 %v493
        %499 = vmatpush.msra.mxu0 %v492
        %500 = vmatpush.msra.mxu0 %v491
        %501 = vmatpush.msra.mxu0 %v490
        %502 = vmatpush.msra.mxu0 %v489
        %503 = vmatpush.msra.mxu0 %v488
        %504 = vmatpush.msra.mxu0 %v487
        %505 = vmatpush.msra.mxu0 %v486
        %506 = vmatpush.msra.mxu0 %v485
        %507 = vmatpush.msra.mxu0 %v484
        %508 = vmatpush.msra.mxu0 %v483
        %509 = vmatpush.msra.mxu0 %v482
        %510 = vmatpush.msra.mxu0 %v481
        %511 = vmatpush.msra.mxu0 %v480
        %512 = vmatpush.msra.mxu0 %v479
        %513 = vmatpush.msra.mxu0 %v478
        %514 = vmatmul.f32.gmra.mxu0 %v476
        %v515 = vpop.f32.mrf.mxu0
        %v516 = vadd.f32 %v496, %v515
        %517 = vmatmul.f32.gmra.mxu0 %v477
        %v518 = vpop.f32.mrf.mxu0
        %v519 = vadd.f32 %v496, %v518
        %520 = vdwg.mxu0
        %v521 = vsub.f32 0.0, %v516
        %v522 = vsub.f32 0.0, %v519
        %v523 = vmul.f32 %v521, 1.442695
        %v524 = vpow.pop %v523
        %v525 = vmul.f32 %v522, 1.442695
        %v526 = vpow.pop %v525
        %v527 = vadd.f32 %v524, 1.0
        %v528 = vadd.f32 %v526, 1.0
        %v529 = vrcp.pop %v527
        %v530 = vmul.f32 %v527, %v529
        %v531 = vsub.f32 1.0, %v530
        %v532 = vmul.f32 %v529, %v531
        %v533 = vadd.f32 %v529, %v532
        %vm534 = vweird.f32 %v527
        %vm535 = vweird.f32 %v529
        %vm536 = vmor %vm534, %vm535
        %v537 = vsel %vm536, %v529, %v533
        %v538 = vand.u32 2147483647, %v527
        %vm539 = vcmp.eq.f32.partialorder %v538, 8.507059e+37
        %v540 = vand.u32 %v527, 2147483648
        %v541 = vor.u32 1.1754944e-38, %v540
        %v542 = vsel %vm539, %v541, %v537
        %v543 = vrcp.pop %v528
        %v544 = vmul.f32 %v528, %v543
        %v545 = vsub.f32 1.0, %v544
        %v546 = vmul.f32 %v543, %v545
        %v547 = vadd.f32 %v543, %v546
        %vm548 = vweird.f32 %v528
        %vm549 = vweird.f32 %v543
        %vm550 = vmor %vm548, %vm549
        %v551 = vsel %vm550, %v543, %v547
        %v552 = vand.u32 2147483647, %v528
        %vm553 = vcmp.eq.f32.partialorder %v552, 8.507059e+37
        %v554 = vand.u32 %v528, 2147483648
        %v555 = vor.u32 1.1754944e-38, %v554
        %v556 = vsel %vm553, %v555, %v551
        %v557 = vmul.f32 %v516, %v542
        %v558 = vmul.f32 %v519, %v556
        %559 = vst [vmem:[%s464] sm:$0xff] %v557
        %560 = vst [vmem:[%s464 + $0x8] sm:$0xff] %v558
        %v561 = vld [vmem:[#allocation8] sm:$0xff]
        %v562 = vld [vmem:[#allocation8 + $0x8] sm:$0xff]
        %v563 = vld [vmem:[#allocation8 + $0x10] sm:$0xff]
        %v564 = vld [vmem:[#allocation8 + $0x18] sm:$0xff]
        %v565 = vld [vmem:[#allocation8 + $0x20] sm:$0xff]
        %v566 = vld [vmem:[#allocation8 + $0x28] sm:$0xff]
        %v567 = vld [vmem:[#allocation8 + $0x30] sm:$0xff]
        %v568 = vld [vmem:[#allocation8 + $0x38] sm:$0xff]
        %v569 = vld [vmem:[#allocation8 + $0x40] sm:$0xff]
        %v570 = vld [vmem:[#allocation8 + $0x48] sm:$0xff]
        %v571 = vld [vmem:[#allocation8 + $0x50] sm:$0xff]
        %v572 = vld [vmem:[#allocation8 + $0x58] sm:$0xff]
        %v573 = vld [vmem:[#allocation8 + $0x60] sm:$0xff]
        %v574 = vld [vmem:[#allocation8 + $0x68] sm:$0xff]
        %v575 = vld [vmem:[#allocation8 + $0x70] sm:$0xff]
        %v576 = vld [vmem:[#allocation8 + $0x78] sm:$0xff]
        %v577 = vld [vmem:[%s5] sm:$0x1]
        %v579 = vperm.slane %v577, 0
        %581 = vmatpush.msra.mxu0 %v576
        %582 = vmatpush.msra.mxu0 %v575
        %583 = vmatpush.msra.mxu0 %v574
        %584 = vmatpush.msra.mxu0 %v573
        %585 = vmatpush.msra.mxu0 %v572
        %586 = vmatpush.msra.mxu0 %v571
        %587 = vmatpush.msra.mxu0 %v570
        %588 = vmatpush.msra.mxu0 %v569
        %589 = vmatpush.msra.mxu0 %v568
        %590 = vmatpush.msra.mxu0 %v567
        %591 = vmatpush.msra.mxu0 %v566
        %592 = vmatpush.msra.mxu0 %v565
        %593 = vmatpush.msra.mxu0 %v564
        %594 = vmatpush.msra.mxu0 %v563
        %595 = vmatpush.msra.mxu0 %v562
        %596 = vmatpush.msra.mxu0 %v561
        %597 = vmatmul.f32.gmra.mxu0 %v476
        %v598 = vpop.f32.mrf.mxu0
        %v599 = vadd.f32 %v579, %v598
        %600 = vmatmul.f32.gmra.mxu0 %v477
        %v601 = vpop.f32.mrf.mxu0
        %v602 = vadd.f32 %v579, %v601
        %603 = vdwg.mxu0
        %v604 = vsub.f32 0.0, %v599
        %v605 = vsub.f32 0.0, %v602
        %v606 = vmul.f32 %v604, 1.442695
        %v607 = vpow.pop %v606
        %v608 = vmul.f32 %v605, 1.442695
        %v609 = vpow.pop %v608
        %v610 = vadd.f32 %v607, 1.0
        %v611 = vadd.f32 %v609, 1.0
        %v612 = vrcp.pop %v610
        %v613 = vmul.f32 %v610, %v612
        %v614 = vsub.f32 1.0, %v613
        %v615 = vmul.f32 %v612, %v614
        %v616 = vadd.f32 %v612, %v615
        %vm617 = vweird.f32 %v610
        %vm618 = vweird.f32 %v612
        %vm619 = vmor %vm617, %vm618
        %v620 = vsel %vm619, %v612, %v616
        %v621 = vand.u32 2147483647, %v610
        %vm622 = vcmp.eq.f32.partialorder %v621, 8.507059e+37
        %v623 = vand.u32 %v610, 2147483648
        %v624 = vor.u32 1.1754944e-38, %v623
        %v625 = vsel %vm622, %v624, %v620
        %v626 = vrcp.pop %v611
        %v627 = vmul.f32 %v611, %v626
        %v628 = vsub.f32 1.0, %v627
        %v629 = vmul.f32 %v626, %v628
        %v630 = vadd.f32 %v626, %v629
        %vm631 = vweird.f32 %v611
        %vm632 = vweird.f32 %v626
        %vm633 = vmor %vm631, %vm632
        %v634 = vsel %vm633, %v626, %v630
        %v635 = vand.u32 2147483647, %v611
        %vm636 = vcmp.eq.f32.partialorder %v635, 8.507059e+37
        %v637 = vand.u32 %v611, 2147483648
        %v638 = vor.u32 1.1754944e-38, %v637
        %v639 = vsel %vm636, %v638, %v634
        %v640 = vmul.f32 %v599, %v625
        %v641 = vmul.f32 %v602, %v639
        %v642 = vld [vmem:[%s406] sm:$0xff]
        %v643 = vld [vmem:[%s406 + $0x8] sm:$0xff]
        %v644 = vld [vmem:[#allocation10] sm:$0xff]
        %v645 = vld [vmem:[#allocation10 + $0x8] sm:$0xff]
        %v646 = vld [vmem:[#allocation10 + $0x10] sm:$0xff]
        %v647 = vld [vmem:[#allocation10 + $0x18] sm:$0xff]
        %v648 = vld [vmem:[#allocation10 + $0x20] sm:$0xff]
        %v649 = vld [vmem:[#allocation10 + $0x28] sm:$0xff]
        %v650 = vld [vmem:[#allocation10 + $0x30] sm:$0xff]
        %v651 = vld [vmem:[#allocation10 + $0x38] sm:$0xff]
        %v652 = vld [vmem:[#allocation10 + $0x40] sm:$0xff]
        %v653 = vld [vmem:[#allocation10 + $0x48] sm:$0xff]
        %v654 = vld [vmem:[#allocation10 + $0x50] sm:$0xff]
        %v655 = vld [vmem:[#allocation10 + $0x58] sm:$0xff]
        %v656 = vld [vmem:[#allocation10 + $0x60] sm:$0xff]
        %v657 = vld [vmem:[#allocation10 + $0x68] sm:$0xff]
        %v658 = vld [vmem:[#allocation10 + $0x70] sm:$0xff]
        %v659 = vld [vmem:[#allocation10 + $0x78] sm:$0xff]
        %660 = vmatpush.msra.mxu0 %v659
        %661 = vmatpush.msra.mxu0 %v658
        %662 = vmatpush.msra.mxu0 %v657
        %663 = vmatpush.msra.mxu0 %v656
        %664 = vmatpush.msra.mxu0 %v655
        %665 = vmatpush.msra.mxu0 %v654
        %666 = vmatpush.msra.mxu0 %v653
        %667 = vmatpush.msra.mxu0 %v652
        %668 = vmatpush.msra.mxu0 %v651
        %669 = vmatpush.msra.mxu0 %v650
        %670 = vmatpush.msra.mxu0 %v649
        %671 = vmatpush.msra.mxu0 %v648
        %672 = vmatpush.msra.mxu0 %v647
        %673 = vmatpush.msra.mxu0 %v646
        %674 = vmatpush.msra.mxu0 %v645
        %675 = vmatpush.msra.mxu0 %v644
        %676 = vmatmul.f32.gmra.mxu0 %v642
        %v677 = vpop.f32.mrf.mxu0
        %v678 = vadd.f32 0.0, %v677
        %679 = vmatmul.f32.gmra.mxu0 %v643
        %v680 = vpop.f32.mrf.mxu0
        %v681 = vadd.f32 0.0, %v680
        %682 = vdwg.mxu0
        %v683 = vmul.f32 %v640, %v678
        %v684 = vmul.f32 %v641, %v681
        %v685 = vld [vmem:[#allocation11] sm:$0xff]
        %v686 = vld [vmem:[#allocation11 + $0x8] sm:$0xff]
        %v687 = vld [vmem:[#allocation11 + $0x10] sm:$0xff]
        %v688 = vld [vmem:[#allocation11 + $0x18] sm:$0xff]
        %v689 = vld [vmem:[#allocation11 + $0x20] sm:$0xff]
        %v690 = vld [vmem:[#allocation11 + $0x28] sm:$0xff]
        %v691 = vld [vmem:[#allocation11 + $0x30] sm:$0xff]
        %v692 = vld [vmem:[#allocation11 + $0x38] sm:$0xff]
        %v693 = vld [vmem:[#allocation11 + $0x40] sm:$0xff]
        %v694 = vld [vmem:[#allocation11 + $0x48] sm:$0xff]
        %v695 = vld [vmem:[#allocation11 + $0x50] sm:$0xff]
        %v696 = vld [vmem:[#allocation11 + $0x58] sm:$0xff]
        %v697 = vld [vmem:[#allocation11 + $0x60] sm:$0xff]
        %v698 = vld [vmem:[#allocation11 + $0x68] sm:$0xff]
        %v699 = vld [vmem:[#allocation11 + $0x70] sm:$0xff]
        %v700 = vld [vmem:[#allocation11 + $0x78] sm:$0xff]
        %701 = vmatpush.msra.mxu0 %v700
        %702 = vmatpush.msra.mxu0 %v699
        %703 = vmatpush.msra.mxu0 %v698
        %704 = vmatpush.msra.mxu0 %v697
        %705 = vmatpush.msra.mxu0 %v696
        %706 = vmatpush.msra.mxu0 %v695
        %707 = vmatpush.msra.mxu0 %v694
        %708 = vmatpush.msra.mxu0 %v693
        %709 = vmatpush.msra.mxu0 %v692
        %710 = vmatpush.msra.mxu0 %v691
        %711 = vmatpush.msra.mxu0 %v690
        %712 = vmatpush.msra.mxu0 %v689
        %713 = vmatpush.msra.mxu0 %v688
        %714 = vmatpush.msra.mxu0 %v687
        %715 = vmatpush.msra.mxu0 %v686
        %716 = vmatpush.msra.mxu0 %v685
        %717 = vmatmul.f32.gmra.mxu0 %v683
        %v718 = vpop.f32.mrf.mxu0
        %v719 = vadd.f32 0.0, %v718
        %720 = vmatmul.f32.gmra.mxu0 %v684
        %v721 = vpop.f32.mrf.mxu0
        %v722 = vadd.f32 0.0, %v721
        %723 = vdwg.mxu0
        %v724 = vsub.f32 0.0, %v719
        %v725 = vsub.f32 0.0, %v722
        %v726 = vmul.f32 %v724, 1.442695
        %v727 = vpow.pop %v726
        %v728 = vmul.f32 %v725, 1.442695
        %v729 = vpow.pop %v728
        %v730 = vadd.f32 %v727, 1.0
        %v731 = vadd.f32 %v729, 1.0
        %v732 = vrcp.pop %v730
        %v733 = vmul.f32 %v730, %v732
        %v734 = vsub.f32 1.0, %v733
        %v735 = vmul.f32 %v732, %v734
        %v736 = vadd.f32 %v732, %v735
        %vm737 = vweird.f32 %v730
        %vm738 = vweird.f32 %v732
        %vm739 = vmor %vm737, %vm738
        %v740 = vsel %vm739, %v732, %v736
        %v741 = vand.u32 2147483647, %v730
        %vm742 = vcmp.eq.f32.partialorder %v741, 8.507059e+37
        %v743 = vand.u32 %v730, 2147483648
        %v744 = vor.u32 1.1754944e-38, %v743
        %v745 = vsel %vm742, %v744, %v740
        %v746 = vrcp.pop %v731
        %v747 = vmul.f32 %v731, %v746
        %v748 = vsub.f32 1.0, %v747
        %v749 = vmul.f32 %v746, %v748
        %v750 = vadd.f32 %v746, %v749
        %vm751 = vweird.f32 %v731
        %vm752 = vweird.f32 %v746
        %vm753 = vmor %vm751, %vm752
        %v754 = vsel %vm753, %v746, %v750
        %v755 = vand.u32 2147483647, %v731
        %vm756 = vcmp.eq.f32.partialorder %v755, 8.507059e+37
        %v757 = vand.u32 %v731, 2147483648
        %v758 = vor.u32 1.1754944e-38, %v757
        %v759 = vsel %vm756, %v758, %v754
        %v760 = vmul.f32 %v719, %v745
        %v761 = vmul.f32 %v722, %v759
        %762 = vst [vmem:[%s471] sm:$0xff] %v760
        %763 = vst [vmem:[%s471 + $0x8] sm:$0xff] %v761
        %s764 = sand.u32 %s221, 1
        %s765 = scalar_lea.sflag [#allocation4], %s764
        %s766 = sand.u32 %s221, 1
        %s767 = smul.addr %s766, 16
        %s768 = scalar_lea.vmem [#allocation13], %s767
        %s769 = sand.u32 %s247, 1
        %s770 = scalar_lea.sflag [#allocation15], %s769
        %s771 = sand.u32 %s247, 1
        %s772 = smul.addr %s771, 16
        %s773 = scalar_lea.vmem [#allocation14], %s772
        // Predicated region
        $region77: #{tpu_custom_call.1} parent=51 // pred_check
          %p774 = pneg %p231
        $region78: #{tpu_custom_call.1} parent=51 // pred_check_branch
          %776 = sbr.rel (%p774) target = $region80
        $region79: #{tpu_custom_call.1} parent=51 // pred_region
          %s777 = smul.u32 2, %s35
          %779 = vsyncadd %s765, 0
          %s780 = smul.addr %s777, 8
          %s781 = scalar_lea.hbm %s8, %s780
          %s782 = sshll.u32 %s768, 4
          %s783 = int_to_ptr.vmem [resolvable:$true] %s782
          %s784 = sshll.u32 %s781, 4
          %s785 = int_to_ptr.hbm [resolvable:$true] %s784
          %790 = dma.vmem_to_hbm [thread:$0]  %s783, 256, %s785, %s765, 128, 128, 8
        $region80: #{tpu_custom_call.1} parent=51 // pred_fallthru
          _
        // Predicated region
        $region81: #{tpu_custom_call.1} parent=51 // pred_check
          %p791 = pneg %p257
        $region82: #{tpu_custom_call.1} parent=51 // pred_check_branch
          %793 = sbr.rel (%p791) target = $region84
        $region83: #{tpu_custom_call.1} parent=51 // pred_region
          %s794 = smul.u32 2, %s35
          %796 = vsyncadd %s770, 0
          %s797 = smul.addr %s794, 8
          %s798 = scalar_lea.hbm %s9, %s797
          %s799 = sshll.u32 %s773, 4
          %s800 = int_to_ptr.vmem [resolvable:$true] %s799
          %s801 = sshll.u32 %s798, 4
          %s802 = int_to_ptr.hbm [resolvable:$true] %s801
          %807 = dma.vmem_to_hbm [thread:$0]  %s800, 256, %s802, %s770, 128, 128, 8
        $region84: #{tpu_custom_call.1} parent=51 // pred_fallthru
          _
      $region52: #{tpu_custom_call.1} parent=5 // pred_fallthru
        _
      %p808 = scmp.le.s32.totalorder 2, %s30
      // Predicated region
      $region85: #{tpu_custom_call.1} parent=5 // pred_check
        %p809 = pneg %p808
      $region86: #{tpu_custom_call.1} parent=5 // pred_check_branch
        %811 = sbr.rel (%p809) target = $region88
      $region87: #{tpu_custom_call.1} parent=5 // pred_region
        %s812 = ssub.s32 %s30, 2
        // Predicated region
        $region89: #{tpu_custom_call.1} parent=87 // pred_check
          %p813 = pneg %p237
        $region90: #{tpu_custom_call.1} parent=87 // pred_check_branch
          %815 = sbr.rel (%p813) target = $region92
        $region91: #{tpu_custom_call.1} parent=87 // pred_region
          %s816 = sand.u32 %s222, 1
          %s817 = scalar_lea.sflag [#allocation4], %s816
          %s818 = sand.u32 %s222, 1
          %s819 = smul.addr %s818, 16
          %s820 = scalar_lea.vmem [#allocation13], %s819
          %822 = dma.done %s817, 256
        $region92: #{tpu_custom_call.1} parent=87 // pred_fallthru
          _
        // Predicated region
        $region93: #{tpu_custom_call.1} parent=87 // pred_check
          %p823 = pneg %p263
        $region94: #{tpu_custom_call.1} parent=87 // pred_check_branch
          %825 = sbr.rel (%p823) target = $region96
        $region95: #{tpu_custom_call.1} parent=87 // pred_region
          %s826 = sand.u32 %s248, 1
          %s827 = scalar_lea.sflag [#allocation15], %s826
          %s828 = sand.u32 %s248, 1
          %s829 = smul.addr %s828, 16
          %s830 = scalar_lea.vmem [#allocation14], %s829
          %832 = dma.done %s827, 256
        $region96: #{tpu_custom_call.1} parent=87 // pred_fallthru
          _
      $region88: #{tpu_custom_call.1} parent=5 // pred_fallthru
        _
    $region6: #{tpu_custom_call.1} parent=1 // loop_footer
      %s34 = sadd.s32 1, %s30
    $region7: #{tpu_custom_call.1} parent=1 // loop_footer_branch
      %29 = sbr.rel target = $region3
    $region8: #{tpu_custom_call.1} parent=1 // loop_exit
      _
    %833 = vsyncpa [#allocation3], 1
    %s834 = scalar_lea.sflag [#allocation3], 1
    %835 = vsyncpa %s834, 1
    %836 = vsyncpa [#allocation6], 1
    %s837 = scalar_lea.sflag [#allocation6], 1
    %838 = vsyncpa %s837, 1
    %839 = vsyncpa [#allocation9], 1
    %840 = vsyncpa [#allocation12], 1
    %841 = vsyncpa [#allocation4], 1
    %s842 = scalar_lea.sflag [#allocation4], 1
    %843 = vsyncpa %s842, 1
    %844 = vsyncpa [#allocation15], 1
    %s845 = scalar_lea.sflag [#allocation15], 1
    %846 = vsyncpa %s845, 1

</llo_original>
